<compile_context>
chip_gen: v7x
topology: tpu7x:2x2x1
jax: 0.10.0
libtpu: 0.0.40
codegen_flags: <defaults>
</compile_context>

<pallas_src>
import math

import numpy as np
import jax
import jax.numpy as jnp
from jax import lax
from jax.experimental import pallas as pl
from jax.experimental.pallas import tpu as pltpu


_LANE = 128
_SUBLANE = 8
_BLOCK_BUDGET = 24 << 20        # bytes of double-buffered blocks + temps per step
_VMEM_FLOOR = 32 << 20          # scoped default on v6e/v7x
_VMEM_CAP = 48 << 20            # stay well under v7x's 64 MiB physical VMEM


def _pad128(cols):
    return ((cols + _LANE - 1) // _LANE) * _LANE


def _vmem_params(est_bytes):
    limit = int(min(max(est_bytes, _VMEM_FLOOR), _VMEM_CAP))
    return pltpu.CompilerParams(dimension_semantics=("parallel",),
                                vmem_limit_bytes=limit)


def _choose_rows(total_rows, per_row_bytes, budget):
    """Rows per grid step.  Returns (blk, grid, pad_rows).

    blk is either the full row count or a multiple of 8 (so the BlockSpec
    sublane rule holds); if no friendly divisor exists the rows are padded.
    """
    cap = max(1, budget // max(per_row_bytes, 1))
    if cap >= total_rows:
        return total_rows, 1, 0
    blk = max(_SUBLANE, (cap // _SUBLANE) * _SUBLANE)
    d = blk
    while d >= _SUBLANE:                       # prefer a divisor: no padding
        if total_rows % d == 0 and 2 * d >= blk:
            return d, total_rows // d, 0
        d -= _SUBLANE
    grid = pl.cdiv(total_rows, blk)
    return blk, grid, grid * blk - total_rows


# ----------------------------- avg / max pooling -----------------------------

def _pool_matrices(h, w, pool, planes, mode, dtype):
    """0/1 pooling matrices, block-diagonal over `planes` planes packed on the
    lane axis.  avg -> (P*h*w, P*ho*wo) window-sum matrix.
    max -> (pool^2, P*h*w, P*ho*wo) per-offset selection matrices."""
    ho, wo = h // pool, w // pool
    hw, hwo = h * w, ho * wo
    s = np.arange(hw)
    hh, ww = s // w, s % w
    out_col = (hh // pool) * wo + (ww // pool)
    off = (hh % pool) * pool + (ww % pool)

    def blockdiag(mat):
        full = np.zeros((planes * hw, planes * hwo), np.float32)
        for q in range(planes):
            full[q * hw:(q + 1) * hw, q * hwo:(q + 1) * hwo] = mat
        return full

    if mode == "avg":
        m = np.zeros((hw, hwo), np.float32)
        m[s, out_col] = 1.0
        return jnp.asarray(blockdiag(m), dtype=dtype)

    sels = []
    for k in range(pool * pool):
        m = np.zeros((hw, hwo), np.float32)
        idx = np.nonzero(off == k)[0]
        m[idx, out_col[idx]] = 1.0
        sels.append(blockdiag(m))
    return jnp.asarray(np.stack(sels), dtype=dtype)


def _make_avg_kernel(inv_scale):
    def kernel(x_ref, m_ref, o_ref):
        acc = jnp.dot(x_ref[...], m_ref[...],
                      preferred_element_type=jnp.float32)     # exact window sums
        o_ref[...] = (acc * inv_scale).astype(o_ref.dtype)
    return kernel


def _make_max_kernel(pp):
    def kernel(x_ref, s_ref, o_ref):
        x = x_ref[...]                                         # stays in input dtype
        acc = jnp.dot(x, s_ref[0], preferred_element_type=jnp.float32)
        for k in range(1, pp):
            acc = jnp.maximum(
                acc, jnp.dot(x, s_ref[k], preferred_element_type=jnp.float32))
        o_ref[...] = acc.astype(o_ref.dtype)
    return kernel


def avg_max_pool(x, pool=2, mode="avg"):
    n, c, h, w = x.shape
    ho, wo = h // pool, w // pool
    if (h, w) != (ho * pool, wo * pool):               # PyTorch floors the remainder
        x = x[:, :, :ho * pool, :wo * pool]
        h, w = ho * pool, wo * pool
    hw, hwo = h * w, ho * wo
    nc = n * c

    # Pack P planes per row so the output lane width P*ho*wo is 128-aligned.
    m = _LANE // math.gcd(_LANE, hwo)
    planes = m if nc % m == 0 else 1                   # fallback: masked (still correct)
    rows = nc // planes
    lin, lout = planes * hw, planes * hwo

    itemsize = jnp.dtype(x.dtype).itemsize
    mats = _pool_matrices(h, w, pool, planes, mode, x.dtype)
    const_bytes = int(mats.size) * itemsize
    per_row = (2 * _pad128(lin) * itemsize             # double-buffered input
               + 2 * _pad128(lout) * itemsize          # double-buffered output
               + 3 * _pad128(lout) * 4)                # f32 temporaries
    budget = max(_BLOCK_BUDGET - const_bytes, 1 << 20)
    blk, grid, pad = _choose_rows(rows, per_row, budget)

    x2 = x.reshape(rows, lin)                          # free reshape of contiguous NCHW
    if pad:
        x2 = jnp.pad(x2, ((0, pad), (0, 0)))

    if mode == "avg":
        kernel = _make_avg_kernel(1.0 / (pool * pool))
        mat_spec = pl.BlockSpec((lin, lout), lambda i: (0, 0))
    elif mode == "max":
        kernel = _make_max_kernel(pool * pool)
        mat_spec = pl.BlockSpec((pool * pool, lin, lout), lambda i: (0, 0, 0))
    else:
        raise ValueError(mode)

    est = blk * per_row + const_bytes + (1 << 20)
    out = pl.pallas_call(
        kernel,
        out_shape=jax.ShapeDtypeStruct((rows + pad, lout), x.dtype),
        grid=(grid,),
        in_specs=[pl.BlockSpec((blk, lin), lambda i: (i, 0)), mat_spec],
        out_specs=pl.BlockSpec((blk, lout), lambda i: (i, 0)),
        compiler_params=_vmem_params(est),
    )(x2, mats)
    if pad:
        out = out[:rows]
    return out.reshape(n, c, ho, wo)                   # free reshape back to NCHW


# ------------------------------ conv pooling ---------------------------------

def _make_conv_kernel(pp, hwo):
    def kernel(x_ref, g_ref, w_ref, b_ref, o_ref):
        # One gather matmul builds all pool^2 patch slabs (columns = (k, o)).
        patches = jnp.dot(x_ref[...], g_ref[...],
                          preferred_element_type=jnp.float32)  # (bn*cin, pp*hwo)
        acc = jnp.dot(w_ref[0], patches[:, 0:hwo],
                      preferred_element_type=jnp.float32)      # (bn*cout, hwo)
        for k in range(1, pp):
            acc = acc + jnp.dot(w_ref[k], patches[:, k * hwo:(k + 1) * hwo],
                                preferred_element_type=jnp.float32)
        o_ref[...] = (acc + b_ref[...]).astype(o_ref.dtype)    # rows = (b, cout): NCHW order
    return kernel


def conv_pool(x, weight, bias, pool=2):
    n, cin, h, w = x.shape
    cout = weight.shape[0]
    ho, wo = h // pool, w // pool
    if (h, w) != (ho * pool, wo * pool):               # strided conv floors too
        x = x[:, :, :ho * pool, :wo * pool]
        h, w = ho * pool, wo * pool
    hw, hwo, pp = h * w, ho * wo, pool * pool
    itemsize = jnp.dtype(x.dtype).itemsize

    # Batch block: padded-VMEM budget, (8,128)-safe row counts, small block-diag weights.
    per_b = (2 * cin * _pad128(hw) * itemsize
             + 2 * cout * _pad128(hwo) * itemsize
             + cin * _pad128(pp * hwo) * 4
             + 2 * cout * _pad128(hwo) * 4)
    best = None
    for d in range(1, n + 1):
        if n % d:
            continue
        fits = (d * per_b <= _BLOCK_BUDGET
                and pp * d * d * cout * cin * 4 <= (4 << 20))
        tile_ok = (d == n) or (d * cin % _SUBLANE == 0 and d * cout % _SUBLANE == 0)
        if tile_ok and (fits or best is None):
            best = d
    bn = best if best is not None else n
    grid = n // bn

    # Gather matrix: GSEL[s, k*hwo + o] = 1 iff pixel s is window offset k of output o.
    s = np.arange(hw)
    hh, ww = s // w, s % w
    o_col = (hh // pool) * wo + (ww // pool)
    k_off = (hh % pool) * pool + (ww % pool)
    gsel_np = np.zeros((hw, pp * hwo), np.float32)
    gsel_np[s, k_off * hwo + o_col] = 1.0
    gsel = jnp.asarray(gsel_np, dtype=x.dtype)

    # Block-diagonal (over the bn batch images) per-offset weight matrices.
    eye = jnp.eye(bn, dtype=jnp.float32)
    w_big = jnp.stack([jnp.kron(eye, weight[:, :, dy, dx].astype(jnp.float32))
                       for dy in range(pool) for dx in range(pool)])   # (pp, bn*cout, bn*cin)
    b_col = jnp.tile(bias.astype(jnp.float32), bn).reshape(bn * cout, 1)

    x2 = x.reshape(n * cin, hw)                        # free reshape of contiguous NCHW
    est = bn * per_b + int(gsel.size) * itemsize + int(w_big.size) * 4 + (1 << 20)
    # TODO(synk): for hwo < 128 the output store is lane-masked; packing two
    # batches onto the lane axis would need an HBM transpose, so it is skipped.
    out = pl.pallas_call(
        _make_conv_kernel(pp, hwo),
        out_shape=jax.ShapeDtypeStruct((n * cout, hwo), x.dtype),
        grid=(grid,),
        in_specs=[
            pl.BlockSpec((bn * cin, hw), lambda i: (i, 0)),
            pl.BlockSpec((hw, pp * hwo), lambda i: (0, 0)),
            pl.BlockSpec((pp, bn * cout, bn * cin), lambda i: (0, 0, 0)),
            pl.BlockSpec((bn * cout, 1), lambda i: (0, 0)),
        ],
        out_specs=pl.BlockSpec((bn * cout, hwo), lambda i: (i, 0)),
        compiler_params=_vmem_params(est),
    )(x2, gsel, w_big, b_col)
    return out.reshape(n, cout, ho, wo)                # free reshape (rows are (b, cout))


# --------------------------------- module ------------------------------------

class PoolingPallas:
    """Forward-pass mirror of the PyTorch Pooling module."""

    def __init__(self, nch=0, pool=2, type="avg", key=None):
        self.pool = pool
        self.type = type
        if type == "conv":
            if key is None:
                key = jax.random.PRNGKey(0)
            kw, kb = jax.random.split(key)
            # nn.Conv2d(nch, nch, kernel_size=pool, stride=pool) parameters
            # (deterministic init; forward semantics are what matter here).
            self.weight = 0.1 * jax.random.normal(
                kw, (nch, nch, pool, pool), dtype=jnp.float32)
            self.bias = 0.1 * jax.random.normal(kb, (nch,), dtype=jnp.float32)

    def __call__(self, x):
        if self.type == "avg":
            return avg_max_pool(x, self.pool, "avg")
        if self.type == "max":
            return avg_max_pool(x, self.pool, "max")
        if self.type == "conv":
            return conv_pool(x, self.weight, self.bias, self.pool)
        raise ValueError(self.type)


# ---------------------------------- main -------------------------------------

if __name__ == "__main__":
    key = jax.random.PRNGKey(0)
    kx, kp = jax.random.split(key)
    N, C, H, W = 2, 4, 16, 16
    POOL = 2
    x = jax.random.normal(kx, (N, C, H, W), dtype=jnp.float32)

    # avg pooling
    y_avg = jax.block_until_ready(PoolingPallas(pool=POOL, type="avg")(x))
    ref_avg = x.reshape(N, C, H // POOL, POOL, W // POOL, POOL).mean(axis=(3, 5))
    assert y_avg.shape == (N, C, H // POOL, W // POOL)
    assert jnp.allclose(y_avg, ref_avg, atol=1e-5), "avg pool mismatch"

    # max pooling
    y_max = jax.block_until_ready(PoolingPallas(pool=POOL, type="max")(x))
    ref_max = x.reshape(N, C, H // POOL, POOL, W // POOL, POOL).max(axis=(3, 5))
    assert jnp.allclose(y_max, ref_max, atol=1e-5), "max pool mismatch"

    # bf16 max pooling (selection matmuls are exact in the input dtype)
    xb = x.astype(jnp.bfloat16)
    y_max_b = jax.block_until_ready(PoolingPallas(pool=POOL, type="max")(xb))
    ref_max_b = xb.reshape(N, C, H // POOL, POOL, W // POOL, POOL).max(axis=(3, 5))
    assert jnp.array_equal(y_max_b, ref_max_b), "bf16 max pool mismatch"

    # conv pooling (strided conv)
    mod = PoolingPallas(nch=C, pool=POOL, type="conv", key=kp)
    y_conv = jax.block_until_ready(mod(x))
    ref_conv = lax.conv_general_dilated(
        x, mod.weight, window_strides=(POOL, POOL), padding="VALID",
        dimension_numbers=("NCHW", "OIHW", "NCHW"),
    ) + mod.bias.reshape(1, C, 1, 1)
    assert y_conv.shape == (N, C, H // POOL, W // POOL)
    assert jnp.allclose(y_conv, ref_conv, atol=1e-4), "conv pool mismatch"

    print("KERNEL_OK")
</pallas_src>

<mosaic_0001>
module attributes {stable_mosaic.version = 11 : i64} {
  func.func @kernel(%arg0: i32, %arg1: memref<4x512xf32, #tpu.memory_space<vmem>>, %arg2: memref<512x128xf32, #tpu.memory_space<vmem>>, %arg3: memref<4x128xf32, #tpu.memory_space<vmem>>) attributes {dimension_semantics = [#tpu.dimension_semantics<parallel>], iteration_bounds = array<i64: 1>, scalar_prefetch = 0 : i64, scratch_operands = 0 : i64, tpu.core_type = #tpu.core_type<tc>, window_params = [{transform_indices = @transform_0, window_bounds = array<i64: 4, 512>}, {pipeline_mode = #tpu.pipeline_mode<synchronous>, transform_indices = @transform_1, window_bounds = array<i64: 512, 128>}, {transform_indices = @transform_2, window_bounds = array<i64: 4, 128>}]} {
    %c0 = arith.constant 0 : index
    %c0_0 = arith.constant 0 : index
    %0 = vector.load %arg1[%c0, %c0_0] : memref<4x512xf32, #tpu.memory_space<vmem>>, vector<4x512xf32>
    %c0_1 = arith.constant 0 : index
    %c0_2 = arith.constant 0 : index
    %1 = vector.load %arg2[%c0_1, %c0_2] : memref<512x128xf32, #tpu.memory_space<vmem>>, vector<512x128xf32>
    %cst = arith.constant dense<0.000000e+00> : vector<4x128xf32>
    %2 = tpu.matmul %0, %1, %cst {dimension_numbers = #tpu.dot_dimension_numbers<[1], [0], [0], [1], [0, 0, 1, 1], [], []>} : vector<4x512xf32>, vector<512x128xf32>, vector<4x128xf32> -> vector<4x128xf32>
    %cst_3 = arith.constant 2.500000e-01 : f32
    %3 = vector.broadcast %cst_3 : f32 to vector<4x128xf32>
    %4 = arith.mulf %2, %3 : vector<4x128xf32>
    %c0_4 = arith.constant 0 : index
    %c0_5 = arith.constant 0 : index
    %5 = vector.load %arg3[%c0_4, %c0_5] : memref<4x128xf32, #tpu.memory_space<vmem>>, vector<4x128xf32>
    tpu.vector_store %arg3[%c0_4, %c0_5], %4 {strides = array<i32>} : memref<4x128xf32, #tpu.memory_space<vmem>>, vector<4x128xf32>,
    return
  }
  func.func @transform_0(%arg0: i32) -> (i32, i32) {
    %c0_i32 = arith.constant 0 : i32
    %c0_i32_0 = arith.constant 0 : i32
    return %arg0, %c0_i32 : i32, i32
  }
  func.func @transform_1(%arg0: i32) -> (i32, i32) {
    %c0_i32 = arith.constant 0 : i32
    %c0_i32_0 = arith.constant 0 : i32
    %c0_i32_1 = arith.constant 0 : i32
    return %c0_i32, %c0_i32_0 : i32, i32
  }
  func.func @transform_2(%arg0: i32) -> (i32, i32) {
    %c0_i32 = arith.constant 0 : i32
    %c0_i32_0 = arith.constant 0 : i32
    return %arg0, %c0_i32 : i32, i32
  }
}

</mosaic_0001>

<llo_original>
// kernel: tpu_custom_call.1
$region0: #{tpu_custom_call.1}
  #allocation0 [shape = 'u32[]', space=smem, size = 0x4, offset = 0x4, fixed_abs, tag = 'smem constant byte address 0x4 - core index']
  #allocation1 [shape = 'u32[144,128]{1,0:T(1,128)}', space=vmem, size = 0x12000, scoped, tag = 'internal scratch']
  %s0 = inlined_call_operand.hbm [shape: f32[4,512], index: 0, kind: input, shape index: {}]
  %s1 = inlined_call_operand.hbm [shape: f32[512,128], index: 1, kind: input, shape index: {}]
  %s2 = inlined_call_operand.hbm [shape: f32[4,128], index: 2, kind: output, shape index: {}]
  %s3 = sld [smem:[#allocation0]]
  $region26: #{tpu_custom_call.1} parent=0
    _
  %s5 = ssub.s32 1, %s3
  %s6 = scalar_select 0, %s5, %s3
  $region1: #{tpu_custom_call.1} parent=0
    #allocation2 [shape = 'u8[8192]{0}', space=vmem, size = 0x2000, scoped, tag = 'input window, operand 0, single buffered']
    #allocation3 [shape = 's32[1]{0}', space=sflag, size = 0x4, scoped, tag = 'scoped memory for tpu_custom_call.1']
    #allocation4 [shape = 's32[1]{0}', space=sflag, size = 0x4, scoped, tag = 'scoped memory for tpu_custom_call.1']
    #allocation5 [shape = 'u8[262144]{0}', space=vmem, size = 0x40000, scoped, tag = 'input window, operand 1, single buffered']
    #allocation6 [shape = 's32[1]{0}', space=sflag, size = 0x4, scoped, tag = 'scoped memory for tpu_custom_call.1']
    #allocation7 [shape = 'u8[2048]{0}', space=vmem, size = 0x800, scoped, tag = 'output window, operand 0, single buffered']
    %7 = vsyncpa [#allocation3], 0
    %8 = vsyncpa [#allocation6], 0
    %9 = vsyncpa [#allocation4], 0
    // Predicated region
    $region2: #{tpu_custom_call.1} parent=1 // pred_check
      _
    $region3: #{tpu_custom_call.1} parent=1 // pred_check_branch
      %11 = sbr.rel (0) target = $region5
    $region4: #{tpu_custom_call.1} parent=1 // pred_region
      %s13 = ssub.s32 256, 256
      %14 = vsyncadd [#allocation3], %s13
      %s16 = sshll.u32 [#allocation2], 4
      %s17 = int_to_ptr.vmem [resolvable:$true] %s16
      %19 = dma.hbm_to_vmem [thread:$0]  %s0, 256, %s17, [#allocation3]
    $region5: #{tpu_custom_call.1} parent=1 // pred_fallthru
      _
    // Predicated region
    $region6: #{tpu_custom_call.1} parent=1 // pred_check
      _
    $region7: #{tpu_custom_call.1} parent=1 // pred_check_branch
      %21 = sbr.rel (0) target = $region9
    $region8: #{tpu_custom_call.1} parent=1 // pred_region
      %s23 = ssub.s32 8192, 8192
      %24 = vsyncadd [#allocation6], %s23
      %s25 = sshll.u32 [#allocation5], 4
      %s26 = int_to_ptr.vmem [resolvable:$true] %s25
      %31 = dma.hbm_to_vmem [thread:$0]  %s1, 8192, %s26, [#allocation6], 128, 128, 8
    $region9: #{tpu_custom_call.1} parent=1 // pred_fallthru
      _
    // Predicated region
    $region10: #{tpu_custom_call.1} parent=1 // pred_check
      _
    $region11: #{tpu_custom_call.1} parent=1 // pred_check_branch
      %33 = sbr.rel (0) target = $region13
    $region12: #{tpu_custom_call.1} parent=1 // pred_region
      %34 = dma.done [#allocation3], 256
    $region13: #{tpu_custom_call.1} parent=1 // pred_fallthru
      _
    // Predicated region
    $region14: #{tpu_custom_call.1} parent=1 // pred_check
      _
    $region15: #{tpu_custom_call.1} parent=1 // pred_check_branch
      %36 = sbr.rel (0) target = $region17
    $region16: #{tpu_custom_call.1} parent=1 // pred_region
      %37 = dma.done [#allocation6], 8192
    $region17: #{tpu_custom_call.1} parent=1 // pred_fallthru
      _
    %v38 = vld [vmem:[#allocation2] sm:$0xff]
    %v39 = vld [vmem:[#allocation2 + $0x8] sm:$0xff]
    %v40 = vld [vmem:[#allocation5] sm:$0xff]
    %v41 = vld [vmem:[#allocation5 + $0x8] sm:$0xff]
    %v42 = vld [vmem:[#allocation5 + $0x10] sm:$0xff]
    %v43 = vld [vmem:[#allocation5 + $0x18] sm:$0xff]
    %v44 = vld [vmem:[#allocation5 + $0x20] sm:$0xff]
    %v45 = vld [vmem:[#allocation5 + $0x28] sm:$0xff]
    %v46 = vld [vmem:[#allocation5 + $0x30] sm:$0xff]
    %v47 = vld [vmem:[#allocation5 + $0x38] sm:$0xff]
    %v48 = vld [vmem:[#allocation5 + $0x40] sm:$0xff]
    %v49 = vld [vmem:[#allocation5 + $0x48] sm:$0xff]
    %v50 = vld [vmem:[#allocation5 + $0x50] sm:$0xff]
    %v51 = vld [vmem:[#allocation5 + $0x58] sm:$0xff]
    %v52 = vld [vmem:[#allocation5 + $0x60] sm:$0xff]
    %v53 = vld [vmem:[#allocation5 + $0x68] sm:$0xff]
    %v54 = vld [vmem:[#allocation5 + $0x70] sm:$0xff]
    %v55 = vld [vmem:[#allocation5 + $0x78] sm:$0xff]
    %v56 = vld [vmem:[#allocation5 + $0x80] sm:$0xff]
    %v57 = vld [vmem:[#allocation5 + $0x88] sm:$0xff]
    %v58 = vld [vmem:[#allocation5 + $0x90] sm:$0xff]
    %v59 = vld [vmem:[#allocation5 + $0x98] sm:$0xff]
    %v60 = vld [vmem:[#allocation5 + $0xa0] sm:$0xff]
    %v61 = vld [vmem:[#allocation5 + $0xa8] sm:$0xff]
    %v62 = vld [vmem:[#allocation5 + $0xb0] sm:$0xff]
    %v63 = vld [vmem:[#allocation5 + $0xb8] sm:$0xff]
    %v64 = vld [vmem:[#allocation5 + $0xc0] sm:$0xff]
    %v65 = vld [vmem:[#allocation5 + $0xc8] sm:$0xff]
    %v66 = vld [vmem:[#allocation5 + $0xd0] sm:$0xff]
    %v67 = vld [vmem:[#allocation5 + $0xd8] sm:$0xff]
    %v68 = vld [vmem:[#allocation5 + $0xe0] sm:$0xff]
    %v69 = vld [vmem:[#allocation5 + $0xe8] sm:$0xff]
    %v70 = vld [vmem:[#allocation5 + $0xf0] sm:$0xff]
    %v71 = vld [vmem:[#allocation5 + $0xf8] sm:$0xff]
    %v72 = vld [vmem:[#allocation5 + $0x100] sm:$0xff]
    %v73 = vld [vmem:[#allocation5 + $0x108] sm:$0xff]
    %v74 = vld [vmem:[#allocation5 + $0x110] sm:$0xff]
    %v75 = vld [vmem:[#allocation5 + $0x118] sm:$0xff]
    %v76 = vld [vmem:[#allocation5 + $0x120] sm:$0xff]
    %v77 = vld [vmem:[#allocation5 + $0x128] sm:$0xff]
    %v78 = vld [vmem:[#allocation5 + $0x130] sm:$0xff]
    %v79 = vld [vmem:[#allocation5 + $0x138] sm:$0xff]
    %v80 = vld [vmem:[#allocation5 + $0x140] sm:$0xff]
    %v81 = vld [vmem:[#allocation5 + $0x148] sm:$0xff]
    %v82 = vld [vmem:[#allocation5 + $0x150] sm:$0xff]
    %v83 = vld [vmem:[#allocation5 + $0x158] sm:$0xff]
    %v84 = vld [vmem:[#allocation5 + $0x160] sm:$0xff]
    %v85 = vld [vmem:[#allocation5 + $0x168] sm:$0xff]
    %v86 = vld [vmem:[#allocation5 + $0x170] sm:$0xff]
    %v87 = vld [vmem:[#allocation5 + $0x178] sm:$0xff]
    %v88 = vld [vmem:[#allocation5 + $0x180] sm:$0xff]
    %v89 = vld [vmem:[#allocation5 + $0x188] sm:$0xff]
    %v90 = vld [vmem:[#allocation5 + $0x190] sm:$0xff]
    %v91 = vld [vmem:[#allocation5 + $0x198] sm:$0xff]
    %v92 = vld [vmem:[#allocation5 + $0x1a0] sm:$0xff]
    %v93 = vld [vmem:[#allocation5 + $0x1a8] sm:$0xff]
    %v94 = vld [vmem:[#allocation5 + $0x1b0] sm:$0xff]
    %v95 = vld [vmem:[#allocation5 + $0x1b8] sm:$0xff]
    %v96 = vld [vmem:[#allocation5 + $0x1c0] sm:$0xff]
    %v97 = vld [vmem:[#allocation5 + $0x1c8] sm:$0xff]
    %v98 = vld [vmem:[#allocation5 + $0x1d0] sm:$0xff]
    %v99 = vld [vmem:[#allocation5 + $0x1d8] sm:$0xff]
    %v100 = vld [vmem:[#allocation5 + $0x1e0] sm:$0xff]
    %v101 = vld [vmem:[#allocation5 + $0x1e8] sm:$0xff]
    %v102 = vld [vmem:[#allocation5 + $0x1f0] sm:$0xff]
    %v103 = vld [vmem:[#allocation5 + $0x1f8] sm:$0xff]
    %v106 = vcombine.high %v38, %v38
    %v107 = vcombine.high %v39, %v39
    %110 = vmatprep.subr.mxu0 0.0
    %111 = vmatpush1.msra.mxu0 %v40
    %112 = vmatprep.subr.mxu0 0.0
    %113 = vmatpush1.msra.mxu0 %v41
    %114 = vmatprep.subr.mxu0 0.0
    %115 = vmatpush1.msra.mxu0 %v42
    %116 = vmatprep.subr.mxu0 0.0
    %117 = vmatpush1.msra.mxu0 %v43
    %118 = vmatprep.subr.mxu0 0.0
    %119 = vmatpush1.msra.mxu0 %v44
    %120 = vmatprep.subr.mxu0 0.0
    %121 = vmatpush1.msra.mxu0 %v45
    %122 = vmatprep.subr.mxu0 0.0
    %123 = vmatpush1.msra.mxu0 %v46
    %124 = vmatprep.subr.mxu0 0.0
    %125 = vmatpush1.msra.mxu0 %v47
    %126 = vmatprep.subr.mxu0 0.0
    %127 = vmatpush1.msra.mxu0 %v48
    %128 = vmatprep.subr.mxu0 0.0
    %129 = vmatpush1.msra.mxu0 %v49
    %130 = vmatprep.subr.mxu0 0.0
    %131 = vmatpush1.msra.mxu0 %v50
    %132 = vmatprep.subr.mxu0 0.0
    %133 = vmatpush1.msra.mxu0 %v51
    %134 = vmatprep.subr.mxu0 0.0
    %135 = vmatpush1.msra.mxu0 %v52
    %136 = vmatprep.subr.mxu0 0.0
    %137 = vmatpush1.msra.mxu0 %v53
    %138 = vmatprep.subr.mxu0 0.0
    %139 = vmatpush1.msra.mxu0 %v54
    %140 = vmatprep.subr.mxu0 0.0
    %141 = vmatpush1.msra.mxu0 %v55
    %142 = vmatprep.subr.mxu0 0.0
    %143 = vmatpush1.msra.mxu0 %v56
    %144 = vmatprep.subr.mxu0 0.0
    %145 = vmatpush1.msra.mxu0 %v57
    %146 = vmatprep.subr.mxu0 0.0
    %147 = vmatpush1.msra.mxu0 %v58
    %148 = vmatprep.subr.mxu0 0.0
    %149 = vmatpush1.msra.mxu0 %v59
    %150 = vmatprep.subr.mxu0 0.0
    %151 = vmatpush1.msra.mxu0 %v60
    %152 = vmatprep.subr.mxu0 0.0
    %153 = vmatpush1.msra.mxu0 %v61
    %154 = vmatprep.subr.mxu0 0.0
    %155 = vmatpush1.msra.mxu0 %v62
    %156 = vmatprep.subr.mxu0 0.0
    %157 = vmatpush1.msra.mxu0 %v63
    %158 = vmatprep.subr.mxu0 0.0
    %159 = vmatpush1.msra.mxu0 %v64
    %160 = vmatprep.subr.mxu0 0.0
    %161 = vmatpush1.msra.mxu0 %v65
    %162 = vmatprep.subr.mxu0 0.0
    %163 = vmatpush1.msra.mxu0 %v66
    %164 = vmatprep.subr.mxu0 0.0
    %165 = vmatpush1.msra.mxu0 %v67
    %166 = vmatprep.subr.mxu0 0.0
    %167 = vmatpush1.msra.mxu0 %v68
    %168 = vmatprep.subr.mxu0 0.0
    %169 = vmatpush1.msra.mxu0 %v69
    %170 = vmatprep.subr.mxu0 0.0
    %171 = vmatpush1.msra.mxu0 %v70
    %172 = vmatprep.subr.mxu0 0.0
    %173 = vmatpush1.msra.mxu0 %v71
    %174 = vmatprep.mubr.f32.mxu0 %v106
    %175 = vmatmul.mubr.f32.gmra.mrb[0].mxu0 %v38
    %v176 = vpop.f32.mrb[0].mxu0
    %v177 = vadd.f32 0.0, %v176
    %v178 = vpop.f32.mrb[0].mxu0
    %179 = vdwg.mxu0
    %180 = vmatprep.subr.mxu0 0.0
    %181 = vmatpush1.msra.mxu0 %v72
    %182 = vmatprep.subr.mxu0 0.0
    %183 = vmatpush1.msra.mxu0 %v73
    %184 = vmatprep.subr.mxu0 0.0
    %185 = vmatpush1.msra.mxu0 %v74
    %186 = vmatprep.subr.mxu0 0.0
    %187 = vmatpush1.msra.mxu0 %v75
    %188 = vmatprep.subr.mxu0 0.0
    %189 = vmatpush1.msra.mxu0 %v76
    %190 = vmatprep.subr.mxu0 0.0
    %191 = vmatpush1.msra.mxu0 %v77
    %192 = vmatprep.subr.mxu0 0.0
    %193 = vmatpush1.msra.mxu0 %v78
    %194 = vmatprep.subr.mxu0 0.0
    %195 = vmatpush1.msra.mxu0 %v79
    %196 = vmatprep.subr.mxu0 0.0
    %197 = vmatpush1.msra.mxu0 %v80
    %198 = vmatprep.subr.mxu0 0.0
    %199 = vmatpush1.msra.mxu0 %v81
    %200 = vmatprep.subr.mxu0 0.0
    %201 = vmatpush1.msra.mxu0 %v82
    %202 = vmatprep.subr.mxu0 0.0
    %203 = vmatpush1.msra.mxu0 %v83
    %204 = vmatprep.subr.mxu0 0.0
    %205 = vmatpush1.msra.mxu0 %v84
    %206 = vmatprep.subr.mxu0 0.0
    %207 = vmatpush1.msra.mxu0 %v85
    %208 = vmatprep.subr.mxu0 0.0
    %209 = vmatpush1.msra.mxu0 %v86
    %210 = vmatprep.subr.mxu0 0.0
    %211 = vmatpush1.msra.mxu0 %v87
    %212 = vmatprep.subr.mxu0 0.0
    %213 = vmatpush1.msra.mxu0 %v88
    %214 = vmatprep.subr.mxu0 0.0
    %215 = vmatpush1.msra.mxu0 %v89
    %216 = vmatprep.subr.mxu0 0.0
    %217 = vmatpush1.msra.mxu0 %v90
    %218 = vmatprep.subr.mxu0 0.0
    %219 = vmatpush1.msra.mxu0 %v91
    %220 = vmatprep.subr.mxu0 0.0
    %221 = vmatpush1.msra.mxu0 %v92
    %222 = vmatprep.subr.mxu0 0.0
    %223 = vmatpush1.msra.mxu0 %v93
    %224 = vmatprep.subr.mxu0 0.0
    %225 = vmatpush1.msra.mxu0 %v94
    %226 = vmatprep.subr.mxu0 0.0
    %227 = vmatpush1.msra.mxu0 %v95
    %228 = vmatprep.subr.mxu0 0.0
    %229 = vmatpush1.msra.mxu0 %v96
    %230 = vmatprep.subr.mxu0 0.0
    %231 = vmatpush1.msra.mxu0 %v97
    %232 = vmatprep.subr.mxu0 0.0
    %233 = vmatpush1.msra.mxu0 %v98
    %234 = vmatprep.subr.mxu0 0.0
    %235 = vmatpush1.msra.mxu0 %v99
    %236 = vmatprep.subr.mxu0 0.0
    %237 = vmatpush1.msra.mxu0 %v100
    %238 = vmatprep.subr.mxu0 0.0
    %239 = vmatpush1.msra.mxu0 %v101
    %240 = vmatprep.subr.mxu0 0.0
    %241 = vmatpush1.msra.mxu0 %v102
    %242 = vmatprep.subr.mxu0 0.0
    %243 = vmatpush1.msra.mxu0 %v103
    %244 = vmatprep.mubr.f32.mxu0 %v107
    %245 = vmatmul.mubr.f32.gmra.mrb[0].mxu0 %v39
    %v246 = vpop.f32.mrb[0].mxu0
    %v247 = vadd.f32 %v177, %v246
    %v248 = vpop.f32.mrb[0].mxu0
    %249 = vdwg.mxu0
    %v250 = vmul.f32 %v247, 0.25
    %251 = vst [vmem:[#allocation7] sm:$0xf] %v250
    // Predicated region
    $region18: #{tpu_custom_call.1} parent=1 // pred_check
      _
    $region19: #{tpu_custom_call.1} parent=1 // pred_check_branch
      %253 = sbr.rel (0) target = $region21
    $region20: #{tpu_custom_call.1} parent=1 // pred_region
      %s255 = ssub.s32 64, 64
      %256 = vsyncadd [#allocation4], %s255
      %s258 = sshll.u32 [#allocation7], 4
      %s259 = int_to_ptr.vmem [resolvable:$true] %s258
      %261 = dma.vmem_to_hbm [thread:$0]  %s259, 64, %s2, [#allocation4]
    $region21: #{tpu_custom_call.1} parent=1 // pred_fallthru
      _
    // Predicated region
    $region22: #{tpu_custom_call.1} parent=1 // pred_check
      _
    $region23: #{tpu_custom_call.1} parent=1 // pred_check_branch
      %263 = sbr.rel (0) target = $region25
    $region24: #{tpu_custom_call.1} parent=1 // pred_region
      %264 = dma.done [#allocation4], 64
    $region25: #{tpu_custom_call.1} parent=1 // pred_fallthru
      _
    %265 = vsyncpa [#allocation3], 1
    %266 = vsyncpa [#allocation6], 1
    %267 = vsyncpa [#allocation4], 1

</llo_original>
